<compile_context>
chip_gen: v6e
topology: v6e:2x2x1
jax: 0.10.0
libtpu: 0.0.40
codegen_flags: <defaults>
</compile_context>

<pallas_src>
import functools

import jax
import jax.numpy as jnp
from jax.experimental import pallas as pl
from jax.experimental.pallas import tpu as pltpu


NUM_CLASSES = 1081  # as in torch.nn.Linear(clip_model.visual.output_dim, 1081)


def _plant_classifier_kernel(x_ref, w_enc_ref, w_head_ref, bias_ref, out_ref, *, d):
    # Stage 1: synthetic encode_image -> features [B, D].
    # x arrives f32 and is cast to bf16 in-kernel (VPU) so the wrapper has no cast op;
    # accumulation stays f32 via preferred_element_type.
    x_bf = x_ref[...].astype(jnp.bfloat16)
    feats = jnp.dot(x_bf, w_enc_ref[...], preferred_element_type=jnp.float32)
    feats = feats + bias_ref[0, :d]                       # rank-1 (lane) broadcast bias

    # Stage 2: classification head against the pre-transposed [D, n_pad] bf16 weight.
    # Contraction is LHS last dim vs RHS first dim -> MXU-native, no weight relayout.
    logits = jnp.dot(feats.astype(jnp.bfloat16), w_head_ref[...],
                     preferred_element_type=jnp.float32)
    out_ref[...] = logits + bias_ref[1, :]                # rank-1 (lane) broadcast bias


def pack_plant_classifier_params(w_enc, b_enc, w_head, b_head):
    """One-time parameter packing (hoisted out of the per-call hot path):
       * bf16 cast of both weights (halves dominant weight-DMA bytes),
       * head weight transposed to MXU-native [D, n_pad] and zero-padded so the class
         dim is lane-dense,
       * both biases merged into a single [2, n_pad] f32 buffer (one DMA instead of two).
    """
    P, D = w_enc.shape
    N = w_head.shape[0]                                   # torch layout [out, in]
    n_pad = ((N + 127) // 128) * 128                      # 1152 = 9 x 128

    w_enc_bf = w_enc.astype(jnp.bfloat16)
    w_head_t = jnp.zeros((D, n_pad), jnp.bfloat16).at[:, :N].set(
        w_head.astype(jnp.bfloat16).T)                    # one-time transpose + pad
    bias = jnp.zeros((2, n_pad), jnp.float32)
    bias = bias.at[0, :D].set(b_enc.astype(jnp.float32))
    bias = bias.at[1, :N].set(b_head.astype(jnp.float32))

    return {"w_enc": w_enc_bf, "w_head_t": w_head_t, "bias": bias,
            "P": P, "D": D, "N": N, "n_pad": n_pad}


def plant_classifier_forward(x_nchw, packed):
    """x_nchw: [B, C, H, W] float32 (PyTorch NCHW). Returns logits [B, 1081] f32."""
    B = x_nchw.shape[0]
    x_flat = x_nchw.reshape(B, -1)                        # matches torch x.view(B, -1)
    P, D, N, n_pad = packed["P"], packed["D"], packed["N"], packed["n_pad"]

    # Small problem: single grid step, full-array blocks (block_shape == array dims
    # satisfies the TPU tiling rule even for non-(8,128)-aligned sizes like B=2, D=64).
    # TODO(synk): once B grows, tile B over a grid axis marked "parallel" so v7x's two
    #             TensorCores share the batch, and pad B to a multiple of 8 for
    #             unmasked f32 output stores.
    full = lambda shape: pl.BlockSpec(shape, lambda: tuple(0 for _ in shape))

    out_pad = pl.pallas_call(
        functools.partial(_plant_classifier_kernel, d=D),
        out_shape=jax.ShapeDtypeStruct((B, n_pad), jnp.float32),
        grid=(),
        in_specs=[
            full((B, P)),        # activations, f32 (cast to bf16 in-kernel)
            full((P, D)),        # encoder weight, bf16
            full((D, n_pad)),    # head weight, bf16, MXU-native layout
            full((2, n_pad)),    # merged biases, f32
        ],
        out_specs=full((B, n_pad)),
        compiler_params=pltpu.CompilerParams(vmem_limit_bytes=8 << 20),
    )(x_flat, packed["w_enc"], packed["w_head_t"], packed["bias"])

    return out_pad[:, :N]                                 # drop lane padding outside kernel


if __name__ == "__main__":
    # Small shapes consistent with the forward: NCHW image, 3 channels,
    # synthetic CLIP output_dim D=64, 1081 plant classes.
    B, C, H, W = 2, 3, 16, 16
    D = 64
    P = C * H * W

    key = jax.random.PRNGKey(0)
    k_x, k_we, k_be, k_wh, k_bh = jax.random.split(key, 5)

    x = jax.random.normal(k_x, (B, C, H, W), dtype=jnp.float32)

    # Deterministic parameter init (synthetic; no checkpoint load).
    w_enc = 0.02 * jax.random.normal(k_we, (P, D), dtype=jnp.float32)
    b_enc = 0.01 * jax.random.normal(k_be, (D,), dtype=jnp.float32)
    w_head = 0.02 * jax.random.normal(k_wh, (NUM_CLASSES, D), dtype=jnp.float32)  # torch [out, in]
    b_head = 0.01 * jax.random.normal(k_bh, (NUM_CLASSES,), dtype=jnp.float32)

    # One-time packing (cast / pad / transpose / bias-merge) — outside the hot path.
    packed = pack_plant_classifier_params(w_enc, b_enc, w_head, b_head)
    packed = jax.tree_util.tree_map(
        lambda a: jax.block_until_ready(a) if isinstance(a, jax.Array) else a, packed)

    # Hot path: reshape -> kernel -> slice, jit-fused, no per-call weight glue.
    fwd = jax.jit(lambda img: plant_classifier_forward(img, packed))

    logits = jax.block_until_ready(fwd(x))
    assert logits.shape == (B, NUM_CLASSES)

    # Pure-JAX reference of the same bf16-weight / f32-accumulate forward.
    x_flat = x.reshape(B, -1)
    feats_ref = jnp.dot(x_flat.astype(jnp.bfloat16), w_enc.astype(jnp.bfloat16),
                        preferred_element_type=jnp.float32) + b_enc
    ref = jnp.dot(feats_ref.astype(jnp.bfloat16), w_head.astype(jnp.bfloat16).T,
                  preferred_element_type=jnp.float32) + b_head
    assert jnp.allclose(logits, ref, atol=1e-2, rtol=1e-2)

    # Looser sanity check against the full-f32 math of the original module semantics.
    ref_f32 = (x_flat @ w_enc + b_enc) @ w_head.T + b_head
    assert jnp.allclose(logits, ref_f32, atol=5e-2, rtol=5e-2)

    print("KERNEL_OK")
</pallas_src>

<mosaic_0001>
module attributes {stable_mosaic.version = 11 : i64} {
  func.func @_plant_classifier_kernel(%arg0: memref<2x768xf32, #tpu.memory_space<vmem>>, %arg1: memref<768x64xbf16, #tpu.memory_space<vmem>>, %arg2: memref<64x1152xbf16, #tpu.memory_space<vmem>>, %arg3: memref<2x1152xf32, #tpu.memory_space<vmem>>, %arg4: memref<2x1152xf32, #tpu.memory_space<vmem>>) attributes {dimension_semantics = [], scalar_prefetch = 0 : i64, scratch_operands = 0 : i64, tpu.core_type = #tpu.core_type<tc>} {
    %c0 = arith.constant 0 : index
    %c0_0 = arith.constant 0 : index
    %0 = vector.load %arg0[%c0, %c0_0] : memref<2x768xf32, #tpu.memory_space<vmem>>, vector<2x768xf32>
    %1 = arith.truncf %0 : vector<2x768xf32> to vector<2x768xbf16>
    %c0_1 = arith.constant 0 : index
    %c0_2 = arith.constant 0 : index
    %2 = vector.load %arg1[%c0_1, %c0_2] : memref<768x64xbf16, #tpu.memory_space<vmem>>, vector<768x64xbf16>
    %cst = arith.constant dense<0.000000e+00> : vector<2x64xf32>
    %3 = tpu.matmul %1, %2, %cst {dimension_numbers = #tpu.dot_dimension_numbers<[1], [0], [0], [1], [0, 0, 1, 1], [], []>} : vector<2x768xbf16>, vector<768x64xbf16>, vector<2x64xf32> -> vector<2x64xf32>
    %c0_3 = arith.constant 0 : index
    %c0_4 = arith.constant 0 : index
    %4 = vector.load %arg3[%c0_3, %c0_4] : memref<2x1152xf32, #tpu.memory_space<vmem>>, vector<1x64xf32>
    %5 = vector.shape_cast %4 : vector<1x64xf32> to vector<64xf32>
    %6 = vector.shape_cast %5 : vector<64xf32> to vector<1x64xf32>
    %7 = vector.broadcast %6 : vector<1x64xf32> to vector<2x64xf32>
    %8 = arith.addf %3, %7 : vector<2x64xf32>
    %9 = arith.truncf %8 : vector<2x64xf32> to vector<2x64xbf16>
    %c0_5 = arith.constant 0 : index
    %c0_6 = arith.constant 0 : index
    %10 = vector.load %arg2[%c0_5, %c0_6] : memref<64x1152xbf16, #tpu.memory_space<vmem>>, vector<64x1152xbf16>
    %cst_7 = arith.constant dense<0.000000e+00> : vector<2x1152xf32>
    %11 = tpu.matmul %9, %10, %cst_7 {dimension_numbers = #tpu.dot_dimension_numbers<[1], [0], [0], [1], [0, 0, 1, 1], [], []>} : vector<2x64xbf16>, vector<64x1152xbf16>, vector<2x1152xf32> -> vector<2x1152xf32>
    %c1 = arith.constant 1 : index
    %c0_8 = arith.constant 0 : index
    %12 = vector.load %arg3[%c1, %c0_8] : memref<2x1152xf32, #tpu.memory_space<vmem>>, vector<1x1152xf32>
    %13 = vector.shape_cast %12 : vector<1x1152xf32> to vector<1152xf32>
    %14 = vector.shape_cast %13 : vector<1152xf32> to vector<1x1152xf32>
    %15 = vector.broadcast %14 : vector<1x1152xf32> to vector<2x1152xf32>
    %16 = arith.addf %11, %15 : vector<2x1152xf32>
    %c0_9 = arith.constant 0 : index
    %c0_10 = arith.constant 0 : index
    %17 = vector.load %arg4[%c0_9, %c0_10] : memref<2x1152xf32, #tpu.memory_space<vmem>>, vector<2x1152xf32>
    tpu.vector_store %arg4[%c0_9, %c0_10], %16 {strides = array<i32>} : memref<2x1152xf32, #tpu.memory_space<vmem>>, vector<2x1152xf32>,
    return
  }
}

</mosaic_0001>

<llo_original>
// kernel: _lambda_.1
$region0: #{_lambda_.1}
  #allocation0 [shape = 'u32[]', space=smem, size = 0x4, offset = 0x4, fixed_abs, tag = 'smem constant byte address 0x4 - core index']
  #allocation1 [shape = 'u32[144,128]{1,0:T(1,128)}', space=vmem, size = 0x12000, scoped, tag = 'internal scratch']
  %s0 = inlined_call_operand.vmem [shape: f32[2,768], index: 0, kind: input, shape index: {}]
  %s1 = inlined_call_operand.hbm [shape: bf16[768,64], index: 1, kind: input, shape index: {}]
  %s2 = inlined_call_operand.hbm [shape: bf16[64,1152], index: 2, kind: input, shape index: {}]
  %s3 = inlined_call_operand.vmem [shape: f32[2,1152], index: 3, kind: input, shape index: {}]
  %s4 = inlined_call_operand.hbm [shape: f32[2,1152], index: 4, kind: output, shape index: {}]
  %s5 = sld [smem:[#allocation0]]
  $region34: #{_lambda_.1} parent=0
    _
  %s7 = ssub.s32 1, %s5
  %s8 = scalar_select 0, %s7, %s5
  $region1: #{_lambda_.1} parent=0
    #allocation2 [shape = 'u8[196608]{0}', space=vmem, size = 0x30000, scoped, tag = 'input window, operand 1, single buffered']
    #allocation3 [shape = 's32[1]{0}', space=sflag, size = 0x4, scoped, tag = 'scoped memory for _lambda_.1']
    #allocation4 [shape = 's32[1]{0}', space=sflag, size = 0x4, scoped, tag = 'scoped memory for _lambda_.1']
    #allocation5 [shape = 'u8[147456]{0}', space=vmem, size = 0x24000, scoped, tag = 'input window, operand 2, single buffered']
    #allocation6 [shape = 's32[1]{0}', space=sflag, size = 0x4, scoped, tag = 'scoped memory for _lambda_.1']
    #allocation7 [shape = 'u8[9216]{0}', space=vmem, size = 0x2400, scoped, tag = 'output window, operand 0, single buffered']
    %9 = vsyncpa [#allocation3], 0
    %10 = vsyncpa [#allocation6], 0
    %11 = vsyncpa [#allocation4], 0
    // Predicated region
    $region2: #{_lambda_.1} parent=1 // pred_check
      _
    $region3: #{_lambda_.1} parent=1 // pred_check_branch
      %13 = sbr.rel (0) target = $region5
    $region4: #{_lambda_.1} parent=1 // pred_region
      _
    $region5: #{_lambda_.1} parent=1 // pred_fallthru
      _
    // Predicated region
    $region6: #{_lambda_.1} parent=1 // pred_check
      _
    $region7: #{_lambda_.1} parent=1 // pred_check_branch
      %15 = sbr.rel (0) target = $region9
    $region8: #{_lambda_.1} parent=1 // pred_region
      %s17 = ssub.s32 6144, 6144
      %18 = vsyncadd [#allocation3], %s17
      %s19 = sshll.u32 [#allocation2], 4
      %s20 = int_to_ptr.vmem [resolvable:$true] %s19
      %25 = dma.hbm_to_vmem [thread:$0]  %s1, 6144, %s20, [#allocation3], 64, 64, 4
    $region9: #{_lambda_.1} parent=1 // pred_fallthru
      _
    // Predicated region
    $region10: #{_lambda_.1} parent=1 // pred_check
      _
    $region11: #{_lambda_.1} parent=1 // pred_check_branch
      %27 = sbr.rel (0) target = $region13
    $region12: #{_lambda_.1} parent=1 // pred_region
      %s29 = ssub.s32 4608, 4608
      %30 = vsyncadd [#allocation6], %s29
      %s31 = sshll.u32 [#allocation5], 4
      %s32 = int_to_ptr.vmem [resolvable:$true] %s31
      %37 = dma.hbm_to_vmem [thread:$0]  %s2, 4608, %s32, [#allocation6], 576, 576, 36
    $region13: #{_lambda_.1} parent=1 // pred_fallthru
      _
    // Predicated region
    $region14: #{_lambda_.1} parent=1 // pred_check
      _
    $region15: #{_lambda_.1} parent=1 // pred_check_branch
      %39 = sbr.rel (0) target = $region17
    $region16: #{_lambda_.1} parent=1 // pred_region
      _
    $region17: #{_lambda_.1} parent=1 // pred_fallthru
      _
    // Predicated region
    $region18: #{_lambda_.1} parent=1 // pred_check
      _
    $region19: #{_lambda_.1} parent=1 // pred_check_branch
      %41 = sbr.rel (0) target = $region21
    $region20: #{_lambda_.1} parent=1 // pred_region
      %42 = dma.done [#allocation3], 6144
    $region21: #{_lambda_.1} parent=1 // pred_fallthru
      _
    // Predicated region
    $region22: #{_lambda_.1} parent=1 // pred_check
      _
    $region23: #{_lambda_.1} parent=1 // pred_check_branch
      %44 = sbr.rel (0) target = $region25
    $region24: #{_lambda_.1} parent=1 // pred_region
      %45 = dma.done [#allocation6], 4608
    $region25: #{_lambda_.1} parent=1 // pred_fallthru
      _
    %v47 = vld [vmem:[%s0] sm:$0xff]
    %v48 = vld [vmem:[%s0 + $0x8] sm:$0xf]
    %v51 = vcombine.high %v47, %v47
    %v53 = vunpack.c.l.s4 1983009808
    %v54 = vunpack.c.0.s8 %v53
    %v55 = vlaneseq
    %v56 = vshrl.u32 %v55, 7
    %v57 = vsub.s32 %v54, %v56
    %v58 = vrot.slane %v47, %v57
    %v60 = vunpack.c.l.s4 1983009808
    %v61 = vunpack.c.0.s8 %v60
    %v62 = vlaneseq
    %v63 = vshrl.u32 %v62, 7
    %v64 = vsub.s32 %v61, %v63
    %v65 = vrot.slane %v51, %v64
    %v66 = vcombine.high %v58, %v58
    %v67 = vcombine.high %v65, %v65
    %v69 = vunpack.c.l.s4 1983009808
    %v70 = vunpack.c.0.s8 %v69
    %v71 = vlaneseq
    %v72 = vshrl.u32 %v71, 7
    %v73 = vsub.s32 %v70, %v72
    %v74 = vrot.slane %v48, %v73
    %v75 = vcombine.high %v74, %v74
    %v82 = vpack.c.bf16 %v58, %v58
    %v83 = vpack.c.bf16 %v66, %v66
    %v84 = vpack.c.bf16 %v65, %v65
    %v85 = vpack.c.bf16 %v67, %v67
    %v86 = vpack.c.bf16 %v74, %v74
    %v87 = vpack.c.bf16 %v75, %v75
    %v88 = vld [vmem:[#allocation2] sm:$0xf]
    %v89 = vld [vmem:[#allocation2 + $0x4] sm:$0xf]
    %v90 = vld [vmem:[#allocation2 + $0x8] sm:$0xf]
    %v91 = vld [vmem:[#allocation2 + $0xc] sm:$0xf]
    %v92 = vld [vmem:[#allocation2 + $0x10] sm:$0xf]
    %v93 = vld [vmem:[#allocation2 + $0x14] sm:$0xf]
    %v94 = vld [vmem:[#allocation2 + $0x18] sm:$0xf]
    %v95 = vld [vmem:[#allocation2 + $0x1c] sm:$0xf]
    %v96 = vld [vmem:[#allocation2 + $0x20] sm:$0xf]
    %v97 = vld [vmem:[#allocation2 + $0x24] sm:$0xf]
    %v98 = vld [vmem:[#allocation2 + $0x28] sm:$0xf]
    %v99 = vld [vmem:[#allocation2 + $0x2c] sm:$0xf]
    %v100 = vld [vmem:[#allocation2 + $0x30] sm:$0xf]
    %v101 = vld [vmem:[#allocation2 + $0x34] sm:$0xf]
    %v102 = vld [vmem:[#allocation2 + $0x38] sm:$0xf]
    %v103 = vld [vmem:[#allocation2 + $0x3c] sm:$0xf]
    %v104 = vld [vmem:[#allocation2 + $0x40] sm:$0xf]
    %v105 = vld [vmem:[#allocation2 + $0x44] sm:$0xf]
    %v106 = vld [vmem:[#allocation2 + $0x48] sm:$0xf]
    %v107 = vld [vmem:[#allocation2 + $0x4c] sm:$0xf]
    %v108 = vld [vmem:[#allocation2 + $0x50] sm:$0xf]
    %v109 = vld [vmem:[#allocation2 + $0x54] sm:$0xf]
    %v110 = vld [vmem:[#allocation2 + $0x58] sm:$0xf]
    %v111 = vld [vmem:[#allocation2 + $0x5c] sm:$0xf]
    %v112 = vld [vmem:[#allocation2 + $0x60] sm:$0xf]
    %v113 = vld [vmem:[#allocation2 + $0x64] sm:$0xf]
    %v114 = vld [vmem:[#allocation2 + $0x68] sm:$0xf]
    %v115 = vld [vmem:[#allocation2 + $0x6c] sm:$0xf]
    %v116 = vld [vmem:[#allocation2 + $0x70] sm:$0xf]
    %v117 = vld [vmem:[#allocation2 + $0x74] sm:$0xf]
    %v118 = vld [vmem:[#allocation2 + $0x78] sm:$0xf]
    %v119 = vld [vmem:[#allocation2 + $0x7c] sm:$0xf]
    %v120 = vld [vmem:[#allocation2 + $0x80] sm:$0xf]
    %v121 = vld [vmem:[#allocation2 + $0x84] sm:$0xf]
    %v122 = vld [vmem:[#allocation2 + $0x88] sm:$0xf]
    %v123 = vld [vmem:[#allocation2 + $0x8c] sm:$0xf]
    %v124 = vld [vmem:[#allocation2 + $0x90] sm:$0xf]
    %v125 = vld [vmem:[#allocation2 + $0x94] sm:$0xf]
    %v126 = vld [vmem:[#allocation2 + $0x98] sm:$0xf]
    %v127 = vld [vmem:[#allocation2 + $0x9c] sm:$0xf]
    %v128 = vld [vmem:[#allocation2 + $0xa0] sm:$0xf]
    %v129 = vld [vmem:[#allocation2 + $0xa4] sm:$0xf]
    %v130 = vld [vmem:[#allocation2 + $0xa8] sm:$0xf]
    %v131 = vld [vmem:[#allocation2 + $0xac] sm:$0xf]
    %v132 = vld [vmem:[#allocation2 + $0xb0] sm:$0xf]
    %v133 = vld [vmem:[#allocation2 + $0xb4] sm:$0xf]
    %v134 = vld [vmem:[#allocation2 + $0xb8] sm:$0xf]
    %v135 = vld [vmem:[#allocation2 + $0xbc] sm:$0xf]
    %v136 = vld [vmem:[#allocation2 + $0xc0] sm:$0xf]
    %v137 = vld [vmem:[#allocation2 + $0xc4] sm:$0xf]
    %v138 = vld [vmem:[#allocation2 + $0xc8] sm:$0xf]
    %v139 = vld [vmem:[#allocation2 + $0xcc] sm:$0xf]
    %v140 = vld [vmem:[#allocation2 + $0xd0] sm:$0xf]
    %v141 = vld [vmem:[#allocation2 + $0xd4] sm:$0xf]
    %v142 = vld [vmem:[#allocation2 + $0xd8] sm:$0xf]
    %v143 = vld [vmem:[#allocation2 + $0xdc] sm:$0xf]
    %v144 = vld [vmem:[#allocation2 + $0xe0] sm:$0xf]
    %v145 = vld [vmem:[#allocation2 + $0xe4] sm:$0xf]
    %v146 = vld [vmem:[#allocation2 + $0xe8] sm:$0xf]
    %v147 = vld [vmem:[#allocation2 + $0xec] sm:$0xf]
    %v148 = vld [vmem:[#allocation2 + $0xf0] sm:$0xf]
    %v149 = vld [vmem:[#allocation2 + $0xf4] sm:$0xf]
    %v150 = vld [vmem:[#allocation2 + $0xf8] sm:$0xf]
    %v151 = vld [vmem:[#allocation2 + $0xfc] sm:$0xf]
    %v152 = vld [vmem:[#allocation2 + $0x100] sm:$0xf]
    %v153 = vld [vmem:[#allocation2 + $0x104] sm:$0xf]
    %v154 = vld [vmem:[#allocation2 + $0x108] sm:$0xf]
    %v155 = vld [vmem:[#allocation2 + $0x10c] sm:$0xf]
    %v156 = vld [vmem:[#allocation2 + $0x110] sm:$0xf]
    %v157 = vld [vmem:[#allocation2 + $0x114] sm:$0xf]
    %v158 = vld [vmem:[#allocation2 + $0x118] sm:$0xf]
    %v159 = vld [vmem:[#allocation2 + $0x11c] sm:$0xf]
    %v160 = vld [vmem:[#allocation2 + $0x120] sm:$0xf]
    %v161 = vld [vmem:[#allocation2 + $0x124] sm:$0xf]
    %v162 = vld [vmem:[#allocation2 + $0x128] sm:$0xf]
    %v163 = vld [vmem:[#allocation2 + $0x12c] sm:$0xf]
    %v164 = vld [vmem:[#allocation2 + $0x130] sm:$0xf]
    %v165 = vld [vmem:[#allocation2 + $0x134] sm:$0xf]
    %v166 = vld [vmem:[#allocation2 + $0x138] sm:$0xf]
    %v167 = vld [vmem:[#allocation2 + $0x13c] sm:$0xf]
    %v168 = vld [vmem:[#allocation2 + $0x140] sm:$0xf]
    %v169 = vld [vmem:[#allocation2 + $0x144] sm:$0xf]
    %v170 = vld [vmem:[#allocation2 + $0x148] sm:$0xf]
    %v171 = vld [vmem:[#allocation2 + $0x14c] sm:$0xf]
    %v172 = vld [vmem:[#allocation2 + $0x150] sm:$0xf]
    %v173 = vld [vmem:[#allocation2 + $0x154] sm:$0xf]
    %v174 = vld [vmem:[#allocation2 + $0x158] sm:$0xf]
    %v175 = vld [vmem:[#allocation2 + $0x15c] sm:$0xf]
    %v176 = vld [vmem:[#allocation2 + $0x160] sm:$0xf]
    %v177 = vld [vmem:[#allocation2 + $0x164] sm:$0xf]
    %v178 = vld [vmem:[#allocation2 + $0x168] sm:$0xf]
    %v179 = vld [vmem:[#allocation2 + $0x16c] sm:$0xf]
    %v180 = vld [vmem:[#allocation2 + $0x170] sm:$0xf]
    %v181 = vld [vmem:[#allocation2 + $0x174] sm:$0xf]
    %v182 = vld [vmem:[#allocation2 + $0x178] sm:$0xf]
    %v183 = vld [vmem:[#allocation2 + $0x17c] sm:$0xf]
    %v184 = vld [vmem:[%s3] sm:$0x1]
    %v185 = vlaneseq
    %v186 = vshrl.u32 %v185, 7
    %v187 = vsub.s32 0, %v186
    %v188 = vrot.slane %v184, %v187
    %v285 = vunpack.c.l.b16 %v88
    %v286 = vunpack.c.l.b16 %v89
    %v287 = vunpack.c.l.b16 %v90
    %v288 = vunpack.c.l.b16 %v91
    %v289 = vunpack.c.l.b16 %v92
    %v290 = vunpack.c.l.b16 %v93
    %v291 = vunpack.c.l.b16 %v94
    %v292 = vunpack.c.l.b16 %v95
    %v293 = vunpack.c.l.b16 %v96
    %v294 = vunpack.c.l.b16 %v97
    %v295 = vunpack.c.l.b16 %v98
    %v296 = vunpack.c.l.b16 %v99
    %v297 = vunpack.c.l.b16 %v100
    %v298 = vunpack.c.l.b16 %v101
    %v299 = vunpack.c.l.b16 %v102
    %v300 = vunpack.c.l.b16 %v103
    %v301 = vunpack.c.l.b16 %v104
    %v302 = vunpack.c.l.b16 %v105
    %v303 = vunpack.c.l.b16 %v106
    %v304 = vunpack.c.l.b16 %v107
    %v305 = vunpack.c.l.b16 %v108
    %v306 = vunpack.c.l.b16 %v109
    %v307 = vunpack.c.l.b16 %v110
    %v308 = vunpack.c.l.b16 %v111
    %v309 = vunpack.c.l.b16 %v112
    %v310 = vunpack.c.l.b16 %v113
    %v311 = vunpack.c.l.b16 %v114
    %v312 = vunpack.c.l.b16 %v115
    %v313 = vunpack.c.l.b16 %v116
    %v314 = vunpack.c.l.b16 %v117
    %v315 = vunpack.c.l.b16 %v118
    %v316 = vunpack.c.l.b16 %v119
    %v317 = vunpack.c.l.b16 %v120
    %v318 = vunpack.c.l.b16 %v121
    %v319 = vunpack.c.l.b16 %v122
    %v320 = vunpack.c.l.b16 %v123
    %v321 = vunpack.c.l.b16 %v124
    %v322 = vunpack.c.l.b16 %v125
    %v323 = vunpack.c.l.b16 %v126
    %v324 = vunpack.c.l.b16 %v127
    %v325 = vunpack.c.l.b16 %v128
    %v326 = vunpack.c.l.b16 %v129
    %v327 = vunpack.c.l.b16 %v130
    %v328 = vunpack.c.l.b16 %v131
    %v329 = vunpack.c.l.b16 %v132
    %v330 = vunpack.c.l.b16 %v133
    %v331 = vunpack.c.l.b16 %v134
    %v332 = vunpack.c.l.b16 %v135
    %v333 = vunpack.c.l.b16 %v136
    %v334 = vunpack.c.l.b16 %v137
    %v335 = vunpack.c.l.b16 %v138
    %v336 = vunpack.c.l.b16 %v139
    %v337 = vunpack.c.l.b16 %v140
    %v338 = vunpack.c.l.b16 %v141
    %v339 = vunpack.c.l.b16 %v142
    %v340 = vunpack.c.l.b16 %v143
    %v341 = vunpack.c.l.b16 %v144
    %v342 = vunpack.c.l.b16 %v145
    %v343 = vunpack.c.l.b16 %v146
    %v344 = vunpack.c.l.b16 %v147
    %v345 = vunpack.c.l.b16 %v148
    %v346 = vunpack.c.l.b16 %v149
    %v347 = vunpack.c.l.b16 %v150
    %v348 = vunpack.c.l.b16 %v151
    %v349 = vunpack.c.l.b16 %v152
    %v350 = vunpack.c.l.b16 %v153
    %v351 = vunpack.c.l.b16 %v154
    %v352 = vunpack.c.l.b16 %v155
    %v353 = vunpack.c.l.b16 %v156
    %v354 = vunpack.c.l.b16 %v157
    %v355 = vunpack.c.l.b16 %v158
    %v356 = vunpack.c.l.b16 %v159
    %v357 = vunpack.c.l.b16 %v160
    %v358 = vunpack.c.l.b16 %v161
    %v359 = vunpack.c.l.b16 %v162
    %v360 = vunpack.c.l.b16 %v163
    %v361 = vunpack.c.l.b16 %v164
    %v362 = vunpack.c.l.b16 %v165
    %v363 = vunpack.c.l.b16 %v166
    %v364 = vunpack.c.l.b16 %v167
    %v365 = vunpack.c.l.b16 %v168
    %v366 = vunpack.c.l.b16 %v169
    %v367 = vunpack.c.l.b16 %v170
    %v368 = vunpack.c.l.b16 %v171
    %v369 = vunpack.c.l.b16 %v172
    %v370 = vunpack.c.l.b16 %v173
    %v371 = vunpack.c.l.b16 %v174
    %v372 = vunpack.c.l.b16 %v175
    %v373 = vunpack.c.l.b16 %v176
    %v374 = vunpack.c.l.b16 %v177
    %v375 = vunpack.c.l.b16 %v178
    %v376 = vunpack.c.l.b16 %v179
    %v377 = vunpack.c.l.b16 %v180
    %v378 = vunpack.c.l.b16 %v181
    %v379 = vunpack.c.l.b16 %v182
    %v380 = vunpack.c.l.b16 %v183
    %v381 = vpack.c.b16 %v286, %v285
    %v382 = vpack.c.b16 %v288, %v287
    %v383 = vpack.c.b16 %v290, %v289
    %v384 = vpack.c.b16 %v292, %v291
    %v385 = vpack.c.b16 %v294, %v293
    %v386 = vpack.c.b16 %v296, %v295
    %v387 = vpack.c.b16 %v298, %v297
    %v388 = vpack.c.b16 %v300, %v299
    %v389 = vpack.c.b16 %v302, %v301
    %v390 = vpack.c.b16 %v304, %v303
    %v391 = vpack.c.b16 %v306, %v305
    %v392 = vpack.c.b16 %v308, %v307
    %v393 = vpack.c.b16 %v310, %v309
    %v394 = vpack.c.b16 %v312, %v311
    %v395 = vpack.c.b16 %v314, %v313
    %v396 = vpack.c.b16 %v316, %v315
    %v397 = vpack.c.b16 %v318, %v317
    %v398 = vpack.c.b16 %v320, %v319
    %v399 = vpack.c.b16 %v322, %v321
    %v400 = vpack.c.b16 %v324, %v323
    %v401 = vpack.c.b16 %v326, %v325
    %v402 = vpack.c.b16 %v328, %v327
    %v403 = vpack.c.b16 %v330, %v329
    %v404 = vpack.c.b16 %v332, %v331
    %v405 = vpack.c.b16 %v334, %v333
    %v406 = vpack.c.b16 %v336, %v335
    %v407 = vpack.c.b16 %v338, %v337
    %v408 = vpack.c.b16 %v340, %v339
    %v409 = vpack.c.b16 %v342, %v341
    %v410 = vpack.c.b16 %v344, %v343
    %v411 = vpack.c.b16 %v346, %v345
    %v412 = vpack.c.b16 %v348, %v347
    %v413 = vpack.c.b16 %v350, %v349
    %v414 = vpack.c.b16 %v352, %v351
    %v415 = vpack.c.b16 %v354, %v353
    %v416 = vpack.c.b16 %v356, %v355
    %v417 = vpack.c.b16 %v358, %v357
    %v418 = vpack.c.b16 %v360, %v359
    %v419 = vpack.c.b16 %v362, %v361
    %v420 = vpack.c.b16 %v364, %v363
    %v421 = vpack.c.b16 %v366, %v365
    %v422 = vpack.c.b16 %v368, %v367
    %v423 = vpack.c.b16 %v370, %v369
    %v424 = vpack.c.b16 %v372, %v371
    %v425 = vpack.c.b16 %v374, %v373
    %v426 = vpack.c.b16 %v376, %v375
    %v427 = vpack.c.b16 %v378, %v377
    %v428 = vpack.c.b16 %v380, %v379
    %477 = vmatprep.subr.bf16.mxu0 0
    %478 = vmatpush1.bf16.msra.mxu0 %v388
    %479 = vmatprep.subr.bf16.mxu0 0
    %480 = vmatpush1.bf16.msra.mxu0 %v387
    %481 = vmatprep.subr.bf16.mxu0 0
    %482 = vmatpush1.bf16.msra.mxu0 %v386
    %483 = vmatprep.subr.bf16.mxu0 0
    %484 = vmatpush1.bf16.msra.mxu0 %v385
    %485 = vmatprep.subr.bf16.mxu0 0
    %486 = vmatpush1.bf16.msra.mxu0 %v384
    %487 = vmatprep.subr.bf16.mxu0 0
    %488 = vmatpush1.bf16.msra.mxu0 %v383
    %489 = vmatprep.subr.bf16.mxu0 0
    %490 = vmatpush1.bf16.msra.mxu0 %v382
    %491 = vmatprep.subr.bf16.mxu0 0
    %492 = vmatpush1.bf16.msra.mxu0 %v381
    %493 = vmatprep.subr.bf16.mxu0 0
    %494 = vmatpush2.bf16.msra.mxu0 %v396
    %495 = vmatprep.subr.bf16.mxu0 0
    %496 = vmatpush2.bf16.msra.mxu0 %v395
    %497 = vmatprep.subr.bf16.mxu0 0
    %498 = vmatpush2.bf16.msra.mxu0 %v394
    %499 = vmatprep.subr.bf16.mxu0 0
    %500 = vmatpush2.bf16.msra.mxu0 %v393
    %501 = vmatprep.subr.bf16.mxu0 0
    %502 = vmatpush2.bf16.msra.mxu0 %v392
    %503 = vmatprep.subr.bf16.mxu0 0
    %504 = vmatpush2.bf16.msra.mxu0 %v391
    %505 = vmatprep.subr.bf16.mxu0 0
    %506 = vmatpush2.bf16.msra.mxu0 %v390
    %507 = vmatprep.subr.bf16.mxu0 0
    %508 = vmatpush2.bf16.msra.mxu0 %v389
    %509 = vmatprep.mubr.bf16.mxu0 %v83
    %510 = vmatmul.mubr.bf16.gmra.mxu0 %v82
    %v511 = vpop.f32.mrf.mxu0
    %v512 = vadd.f32 %v188, %v511
    %v513 = vpop.f32.mrf.mxu0
    %v514 = vpop.f32.mrf.mxu0
    %v515 = vpop.f32.mrf.mxu0
    %516 = vdwg.mxu0
    %517 = vmatprep.subr.bf16.mxu0 0
    %518 = vmatpush1.bf16.msra.mxu0 %v404
    %519 = vmatprep.subr.bf16.mxu0 0
    %520 = vmatpush1.bf16.msra.mxu0 %v403
    %521 = vmatprep.subr.bf16.mxu0 0
    %522 = vmatpush1.bf16.msra.mxu0 %v402
    %523 = vmatprep.subr.bf16.mxu0 0
    %524 = vmatpush1.bf16.msra.mxu0 %v401
    %525 = vmatprep.subr.bf16.mxu0 0
    %526 = vmatpush1.bf16.msra.mxu0 %v400
    %527 = vmatprep.subr.bf16.mxu0 0
    %528 = vmatpush1.bf16.msra.mxu0 %v399
    %529 = vmatprep.subr.bf16.mxu0 0
    %530 = vmatpush1.bf16.msra.mxu0 %v398
    %531 = vmatprep.subr.bf16.mxu0 0
    %532 = vmatpush1.bf16.msra.mxu0 %v397
    %533 = vmatprep.subr.bf16.mxu0 0
    %534 = vmatpush2.bf16.msra.mxu0 %v412
    %535 = vmatprep.subr.bf16.mxu0 0
    %536 = vmatpush2.bf16.msra.mxu0 %v411
    %537 = vmatprep.subr.bf16.mxu0 0
    %538 = vmatpush2.bf16.msra.mxu0 %v410
    %539 = vmatprep.subr.bf16.mxu0 0
    %540 = vmatpush2.bf16.msra.mxu0 %v409
    %541 = vmatprep.subr.bf16.mxu0 0
    %542 = vmatpush2.bf16.msra.mxu0 %v408
    %543 = vmatprep.subr.bf16.mxu0 0
    %544 = vmatpush2.bf16.msra.mxu0 %v407
    %545 = vmatprep.subr.bf16.mxu0 0
    %546 = vmatpush2.bf16.msra.mxu0 %v406
    %547 = vmatprep.subr.bf16.mxu0 0
    %548 = vmatpush2.bf16.msra.mxu0 %v405
    %549 = vmatprep.mubr.bf16.mxu0 %v85
    %550 = vmatmul.mubr.bf16.gmra.mxu0 %v84
    %v551 = vpop.f32.mrf.mxu0
    %v552 = vadd.f32 %v512, %v551
    %v553 = vpop.f32.mrf.mxu0
    %v554 = vpop.f32.mrf.mxu0
    %v555 = vpop.f32.mrf.mxu0
    %556 = vdwg.mxu0
    %557 = vmatprep.subr.bf16.mxu0 0
    %558 = vmatpush1.bf16.msra.mxu0 %v420
    %559 = vmatprep.subr.bf16.mxu0 0
    %560 = vmatpush1.bf16.msra.mxu0 %v419
    %561 = vmatprep.subr.bf16.mxu0 0
    %562 = vmatpush1.bf16.msra.mxu0 %v418
    %563 = vmatprep.subr.bf16.mxu0 0
    %564 = vmatpush1.bf16.msra.mxu0 %v417
    %565 = vmatprep.subr.bf16.mxu0 0
    %566 = vmatpush1.bf16.msra.mxu0 %v416
    %567 = vmatprep.subr.bf16.mxu0 0
    %568 = vmatpush1.bf16.msra.mxu0 %v415
    %569 = vmatprep.subr.bf16.mxu0 0
    %570 = vmatpush1.bf16.msra.mxu0 %v414
    %571 = vmatprep.subr.bf16.mxu0 0
    %572 = vmatpush1.bf16.msra.mxu0 %v413
    %573 = vmatprep.subr.bf16.mxu0 0
    %574 = vmatpush2.bf16.msra.mxu0 %v428
    %575 = vmatprep.subr.bf16.mxu0 0
    %576 = vmatpush2.bf16.msra.mxu0 %v427
    %577 = vmatprep.subr.bf16.mxu0 0
    %578 = vmatpush2.bf16.msra.mxu0 %v426
    %579 = vmatprep.subr.bf16.mxu0 0
    %580 = vmatpush2.bf16.msra.mxu0 %v425
    %581 = vmatprep.subr.bf16.mxu0 0
    %582 = vmatpush2.bf16.msra.mxu0 %v424
    %583 = vmatprep.subr.bf16.mxu0 0
    %584 = vmatpush2.bf16.msra.mxu0 %v423
    %585 = vmatprep.subr.bf16.mxu0 0
    %586 = vmatpush2.bf16.msra.mxu0 %v422
    %587 = vmatprep.subr.bf16.mxu0 0
    %588 = vmatpush2.bf16.msra.mxu0 %v421
    %589 = vmatprep.mubr.bf16.mxu0 %v87
    %590 = vmatmul.mubr.bf16.gmra.mxu0 %v86
    %v591 = vpop.f32.mrf.mxu0
    %v592 = vadd.f32 %v552, %v591
    %v593 = vpop.f32.mrf.mxu0
    %v594 = vpop.f32.mrf.mxu0
    %v595 = vpop.f32.mrf.mxu0
    %596 = vdwg.mxu0
    %v597 = vpack.c.bf16 %v592, %v592
    %v598 = vld [vmem:[#allocation5] sm:$0xff]
    %v599 = vld [vmem:[#allocation5 + $0x8] sm:$0xff]
    %v600 = vld [vmem:[#allocation5 + $0x10] sm:$0xff]
    %v601 = vld [vmem:[#allocation5 + $0x18] sm:$0xff]
    %v602 = vld [vmem:[#allocation5 + $0x20] sm:$0xf]
    %v603 = vld [vmem:[#allocation5 + $0x24] sm:$0xff]
    %v604 = vld [vmem:[#allocation5 + $0x2c] sm:$0xff]
    %v605 = vld [vmem:[#allocation5 + $0x34] sm:$0xff]
    %v606 = vld [vmem:[#allocation5 + $0x3c] sm:$0xff]
    %v607 = vld [vmem:[#allocation5 + $0x44] sm:$0xf]
    %v608 = vld [vmem:[#allocation5 + $0x48] sm:$0xff]
    %v609 = vld [vmem:[#allocation5 + $0x50] sm:$0xff]
    %v610 = vld [vmem:[#allocation5 + $0x58] sm:$0xff]
    %v611 = vld [vmem:[#allocation5 + $0x60] sm:$0xff]
    %v612 = vld [vmem:[#allocation5 + $0x68] sm:$0xf]
    %v613 = vld [vmem:[#allocation5 + $0x6c] sm:$0xff]
    %v614 = vld [vmem:[#allocation5 + $0x74] sm:$0xff]
    %v615 = vld [vmem:[#allocation5 + $0x7c] sm:$0xff]
    %v616 = vld [vmem:[#allocation5 + $0x84] sm:$0xff]
    %v617 = vld [vmem:[#allocation5 + $0x8c] sm:$0xf]
    %v618 = vld [vmem:[#allocation5 + $0x90] sm:$0xff]
    %v619 = vld [vmem:[#allocation5 + $0x98] sm:$0xff]
    %v620 = vld [vmem:[#allocation5 + $0xa0] sm:$0xff]
    %v621 = vld [vmem:[#allocation5 + $0xa8] sm:$0xff]
    %v622 = vld [vmem:[#allocation5 + $0xb0] sm:$0xf]
    %v623 = vld [vmem:[#allocation5 + $0xb4] sm:$0xff]
    %v624 = vld [vmem:[#allocation5 + $0xbc] sm:$0xff]
    %v625 = vld [vmem:[#allocation5 + $0xc4] sm:$0xff]
    %v626 = vld [vmem:[#allocation5 + $0xcc] sm:$0xff]
    %v627 = vld [vmem:[#allocation5 + $0xd4] sm:$0xf]
    %v628 = vld [vmem:[#allocation5 + $0xd8] sm:$0xff]
    %v629 = vld [vmem:[#allocation5 + $0xe0] sm:$0xff]
    %v630 = vld [vmem:[#allocation5 + $0xe8] sm:$0xff]
    %v631 = vld [vmem:[#allocation5 + $0xf0] sm:$0xff]
    %v632 = vld [vmem:[#allocation5 + $0xf8] sm:$0xf]
    %v633 = vld [vmem:[#allocation5 + $0xfc] sm:$0xff]
    %v634 = vld [vmem:[#allocation5 + $0x104] sm:$0xff]
    %v635 = vld [vmem:[#allocation5 + $0x10c] sm:$0xff]
    %v636 = vld [vmem:[#allocation5 + $0x114] sm:$0xff]
    %v637 = vld [vmem:[#allocation5 + $0x11c] sm:$0xf]
    %s638 = scalar_lea.vmem %s3, 1
    %v639 = vld [vmem:[%s638] ss:$2 sm:$0xff]
    %s640 = scalar_lea.vmem %s3, 17
    %v641 = vld [vmem:[%s640] ss:$2 sm:$0x1]
    %v644 = vlaneseq
    %v645 = vshrl.u32 %v644, 7
    %v646 = vsub.s32 0, %v645
    %v647 = vrot.slane %v639, %v646
    %v648 = vlaneseq
    %v649 = vshrl.u32 %v648, 7
    %v650 = vsub.s32 1, %v649
    %v651 = vrot.slane %v639, %v650
    %v652 = vlaneseq
    %v653 = vshrl.u32 %v652, 7
    %v654 = vsub.s32 2, %v653
    %v655 = vrot.slane %v639, %v654
    %v656 = vlaneseq
    %v657 = vshrl.u32 %v656, 7
    %v658 = vsub.s32 3, %v657
    %v659 = vrot.slane %v639, %v658
    %v660 = vlaneseq
    %v661 = vshrl.u32 %v660, 7
    %v662 = vsub.s32 4, %v661
    %v663 = vrot.slane %v639, %v662
    %v664 = vlaneseq
    %v665 = vshrl.u32 %v664, 7
    %v666 = vsub.s32 5, %v665
    %v667 = vrot.slane %v639, %v666
    %v668 = vlaneseq
    %v669 = vshrl.u32 %v668, 7
    %v670 = vsub.s32 6, %v669
    %v671 = vrot.slane %v639, %v670
    %v672 = vlaneseq
    %v673 = vshrl.u32 %v672, 7
    %v674 = vsub.s32 7, %v673
    %v675 = vrot.slane %v639, %v674
    %v676 = vlaneseq
    %v677 = vshrl.u32 %v676, 7
    %v678 = vsub.s32 0, %v677
    %v679 = vrot.slane %v641, %v678
    %v729 = vunpack.c.l.b16 %v598
    %v730 = vunpack.c.h.b16 %v598
    %v731 = vunpack.c.l.b16 %v599
    %v732 = vunpack.c.h.b16 %v599
    %v733 = vunpack.c.l.b16 %v600
    %v734 = vunpack.c.h.b16 %v600
    %v735 = vunpack.c.l.b16 %v601
    %v736 = vunpack.c.h.b16 %v601
    %v737 = vunpack.c.l.b16 %v602
    %v738 = vunpack.c.l.b16 %v603
    %v739 = vunpack.c.h.b16 %v603
    %v740 = vunpack.c.l.b16 %v604
    %v741 = vunpack.c.h.b16 %v604
    %v742 = vunpack.c.l.b16 %v605
    %v743 = vunpack.c.h.b16 %v605
    %v744 = vunpack.c.l.b16 %v606
    %v745 = vunpack.c.h.b16 %v606
    %v746 = vunpack.c.l.b16 %v607
    %v747 = vunpack.c.l.b16 %v608
    %v748 = vunpack.c.h.b16 %v608
    %v749 = vunpack.c.l.b16 %v609
    %v750 = vunpack.c.h.b16 %v609
    %v751 = vunpack.c.l.b16 %v610
    %v752 = vunpack.c.h.b16 %v610
    %v753 = vunpack.c.l.b16 %v611
    %v754 = vunpack.c.h.b16 %v611
    %v755 = vunpack.c.l.b16 %v612
    %v756 = vunpack.c.l.b16 %v613
    %v757 = vunpack.c.h.b16 %v613
    %v758 = vunpack.c.l.b16 %v614
    %v759 = vunpack.c.h.b16 %v614
    %v760 = vunpack.c.l.b16 %v615
    %v761 = vunpack.c.h.b16 %v615
    %v762 = vunpack.c.l.b16 %v616
    %v763 = vunpack.c.h.b16 %v616
    %v764 = vunpack.c.l.b16 %v617
    %v765 = vunpack.c.l.b16 %v618
    %v766 = vunpack.c.h.b16 %v618
    %v767 = vunpack.c.l.b16 %v619
    %v768 = vunpack.c.h.b16 %v619
    %v769 = vunpack.c.l.b16 %v620
    %v770 = vunpack.c.h.b16 %v620
    %v771 = vunpack.c.l.b16 %v621
    %v772 = vunpack.c.h.b16 %v621
    %v773 = vunpack.c.l.b16 %v622
    %v774 = vunpack.c.l.b16 %v623
    %v775 = vunpack.c.h.b16 %v623
    %v776 = vunpack.c.l.b16 %v624
    %v777 = vunpack.c.h.b16 %v624
    %v778 = vunpack.c.l.b16 %v625
    %v779 = vunpack.c.h.b16 %v625
    %v780 = vunpack.c.l.b16 %v626
    %v781 = vunpack.c.h.b16 %v626
    %v782 = vunpack.c.l.b16 %v627
    %v783 = vunpack.c.l.b16 %v628
    %v784 = vunpack.c.h.b16 %v628
    %v785 = vunpack.c.l.b16 %v629
    %v786 = vunpack.c.h.b16 %v629
    %v787 = vunpack.c.l.b16 %v630
    %v788 = vunpack.c.h.b16 %v630
    %v789 = vunpack.c.l.b16 %v631
    %v790 = vunpack.c.h.b16 %v631
    %v791 = vunpack.c.l.b16 %v632
    %v792 = vunpack.c.l.b16 %v633
    %v793 = vunpack.c.h.b16 %v633
    %v794 = vunpack.c.l.b16 %v634
    %v795 = vunpack.c.h.b16 %v634
    %v796 = vunpack.c.l.b16 %v635
    %v797 = vunpack.c.h.b16 %v635
    %v798 = vunpack.c.l.b16 %v636
    %v799 = vunpack.c.h.b16 %v636
    %v800 = vunpack.c.l.b16 %v637
    %v801 = vpack.c.b16 %v738, %v729
    %v802 = vpack.c.b16 %v739, %v730
    %v803 = vpack.c.b16 %v740, %v731
    %v804 = vpack.c.b16 %v741, %v732
    %v805 = vpack.c.b16 %v742, %v733
    %v806 = vpack.c.b16 %v743, %v734
    %v807 = vpack.c.b16 %v744, %v735
    %v808 = vpack.c.b16 %v745, %v736
    %v809 = vpack.c.b16 %v746, %v737
    %v810 = vpack.c.b16 %v756, %v747
    %v811 = vpack.c.b16 %v757, %v748
    %v812 = vpack.c.b16 %v758, %v749
    %v813 = vpack.c.b16 %v759, %v750
    %v814 = vpack.c.b16 %v760, %v751
    %v815 = vpack.c.b16 %v761, %v752
    %v816 = vpack.c.b16 %v762, %v753
    %v817 = vpack.c.b16 %v763, %v754
    %v818 = vpack.c.b16 %v764, %v755
    %v819 = vpack.c.b16 %v774, %v765
    %v820 = vpack.c.b16 %v775, %v766
    %v821 = vpack.c.b16 %v776, %v767
    %v822 = vpack.c.b16 %v777, %v768
    %v823 = vpack.c.b16 %v778, %v769
    %v824 = vpack.c.b16 %v779, %v770
    %v825 = vpack.c.b16 %v780, %v771
    %v826 = vpack.c.b16 %v781, %v772
    %v827 = vpack.c.b16 %v782, %v773
    %v828 = vpack.c.b16 %v792, %v783
    %v829 = vpack.c.b16 %v793, %v784
    %v830 = vpack.c.b16 %v794, %v785
    %v831 = vpack.c.b16 %v795, %v786
    %v832 = vpack.c.b16 %v796, %v787
    %v833 = vpack.c.b16 %v797, %v788
    %v834 = vpack.c.b16 %v798, %v789
    %v835 = vpack.c.b16 %v799, %v790
    %v836 = vpack.c.b16 %v800, %v791
    %vm873 = vcmask 523264
    %v875 = vsel %vm873, %v597, 0
    %877 = vmatprep.subr.bf16.mxu0 0
    %878 = vmatpush1.bf16.msra.mxu0 0
    %879 = vmatprep.subr.bf16.mxu0 0
    %880 = vmatpush1.bf16.msra.mxu0 0
    %881 = vmatprep.subr.bf16.mxu0 0
    %882 = vmatpush1.bf16.msra.mxu0 0
    %883 = vmatprep.subr.bf16.mxu0 0
    %884 = vmatpush1.bf16.msra.mxu0 0
    %885 = vmatprep.subr.bf16.mxu0 %v829
    %886 = vmatpush1.bf16.msra.mxu0 %v828
    %887 = vmatprep.subr.bf16.mxu0 %v820
    %888 = vmatpush1.bf16.msra.mxu0 %v819
    %889 = vmatprep.subr.bf16.mxu0 %v811
    %890 = vmatpush1.bf16.msra.mxu0 %v810
    %891 = vmatprep.subr.bf16.mxu0 %v802
    %892 = vmatpush1.bf16.msra.mxu0 %v801
    %893 = vmatprep.subr.bf16.mxu0 0
    %894 = vmatpush2.bf16.msra.mxu0 0
    %895 = vmatprep.subr.bf16.mxu0 0
    %896 = vmatpush2.bf16.msra.mxu0 0
    %897 = vmatprep.subr.bf16.mxu0 0
    %898 = vmatpush2.bf16.msra.mxu0 0
    %899 = vmatprep.subr.bf16.mxu0 0
    %900 = vmatpush2.bf16.msra.mxu0 0
    %901 = vmatprep.subr.bf16.mxu0 0
    %902 = vmatpush2.bf16.msra.mxu0 0
    %903 = vmatprep.subr.bf16.mxu0 0
    %904 = vmatpush2.bf16.msra.mxu0 0
    %905 = vmatprep.subr.bf16.mxu0 0
    %906 = vmatpush2.bf16.msra.mxu0 0
    %907 = vmatprep.subr.bf16.mxu0 0
    %908 = vmatpush2.bf16.msra.mxu0 0
    %909 = vmatprep.mubr.bf16.mxu0 0
    %910 = vmatmul.mubr.bf16.gmra.mxu0 %v875
    %v911 = vpop.f32.mrf.mxu0
    %v912 = vadd.f32 %v647, %v911
    %v913 = vpop.f32.mrf.mxu0
    %v914 = vadd.f32 %v651, %v913
    %v915 = vpop.f32.mrf.mxu0
    %v916 = vpop.f32.mrf.mxu0
    %917 = vdwg.mxu0
    %918 = vmatprep.subr.bf16.mxu0 0
    %919 = vmatpush1.bf16.msra.mxu0 0
    %920 = vmatprep.subr.bf16.mxu0 0
    %921 = vmatpush1.bf16.msra.mxu0 0
    %922 = vmatprep.subr.bf16.mxu0 0
    %923 = vmatpush1.bf16.msra.mxu0 0
    %924 = vmatprep.subr.bf16.mxu0 0
    %925 = vmatpush1.bf16.msra.mxu0 0
    %926 = vmatprep.subr.bf16.mxu0 %v831
    %927 = vmatpush1.bf16.msra.mxu0 %v830
    %928 = vmatprep.subr.bf16.mxu0 %v822
    %929 = vmatpush1.bf16.msra.mxu0 %v821
    %930 = vmatprep.subr.bf16.mxu0 %v813
    %931 = vmatpush1.bf16.msra.mxu0 %v812
    %932 = vmatprep.subr.bf16.mxu0 %v804
    %933 = vmatpush1.bf16.msra.mxu0 %v803
    %934 = vmatprep.subr.bf16.mxu0 0
    %935 = vmatpush2.bf16.msra.mxu0 0
    %936 = vmatprep.subr.bf16.mxu0 0
    %937 = vmatpush2.bf16.msra.mxu0 0
    %938 = vmatprep.subr.bf16.mxu0 0
    %939 = vmatpush2.bf16.msra.mxu0 0
    %940 = vmatprep.subr.bf16.mxu0 0
    %941 = vmatpush2.bf16.msra.mxu0 0
    %942 = vmatprep.subr.bf16.mxu0 0
    %943 = vmatpush2.bf16.msra.mxu0 0
    %944 = vmatprep.subr.bf16.mxu0 0
    %945 = vmatpush2.bf16.msra.mxu0 0
    %946 = vmatprep.subr.bf16.mxu0 0
    %947 = vmatpush2.bf16.msra.mxu0 0
    %948 = vmatprep.subr.bf16.mxu0 0
    %949 = vmatpush2.bf16.msra.mxu0 0
    %950 = vmatprep.mubr.bf16.mxu0 0
    %951 = vmatmul.mubr.bf16.gmra.mxu0 %v875
    %v952 = vpop.f32.mrf.mxu0
    %v953 = vadd.f32 %v655, %v952
    %v954 = vpop.f32.mrf.mxu0
    %v955 = vadd.f32 %v659, %v954
    %v956 = vpop.f32.mrf.mxu0
    %v957 = vpop.f32.mrf.mxu0
    %958 = vdwg.mxu0
    %959 = vmatprep.subr.bf16.mxu0 0
    %960 = vmatpush1.bf16.msra.mxu0 0
    %961 = vmatprep.subr.bf16.mxu0 0
    %962 = vmatpush1.bf16.msra.mxu0 0
    %963 = vmatprep.subr.bf16.mxu0 0
    %964 = vmatpush1.bf16.msra.mxu0 0
    %965 = vmatprep.subr.bf16.mxu0 0
    %966 = vmatpush1.bf16.msra.mxu0 0
    %967 = vmatprep.subr.bf16.mxu0 %v833
    %968 = vmatpush1.bf16.msra.mxu0 %v832
    %969 = vmatprep.subr.bf16.mxu0 %v824
    %970 = vmatpush1.bf16.msra.mxu0 %v823
    %971 = vmatprep.subr.bf16.mxu0 %v815
    %972 = vmatpush1.bf16.msra.mxu0 %v814
    %973 = vmatprep.subr.bf16.mxu0 %v806
    %974 = vmatpush1.bf16.msra.mxu0 %v805
    %975 = vmatprep.subr.bf16.mxu0 0
    %976 = vmatpush2.bf16.msra.mxu0 0
    %977 = vmatprep.subr.bf16.mxu0 0
    %978 = vmatpush2.bf16.msra.mxu0 0
    %979 = vmatprep.subr.bf16.mxu0 0
    %980 = vmatpush2.bf16.msra.mxu0 0
    %981 = vmatprep.subr.bf16.mxu0 0
    %982 = vmatpush2.bf16.msra.mxu0 0
    %983 = vmatprep.subr.bf16.mxu0 0
    %984 = vmatpush2.bf16.msra.mxu0 0
    %985 = vmatprep.subr.bf16.mxu0 0
    %986 = vmatpush2.bf16.msra.mxu0 0
    %987 = vmatprep.subr.bf16.mxu0 0
    %988 = vmatpush2.bf16.msra.mxu0 0
    %989 = vmatprep.subr.bf16.mxu0 0
    %990 = vmatpush2.bf16.msra.mxu0 0
    %991 = vmatprep.mubr.bf16.mxu0 0
    %992 = vmatmul.mubr.bf16.gmra.mxu0 %v875
    %v993 = vpop.f32.mrf.mxu0
    %v994 = vadd.f32 %v663, %v993
    %v995 = vpop.f32.mrf.mxu0
    %v996 = vadd.f32 %v667, %v995
    %v997 = vpop.f32.mrf.mxu0
    %v998 = vpop.f32.mrf.mxu0
    %999 = vdwg.mxu0
    %1000 = vmatprep.subr.bf16.mxu0 0
    %1001 = vmatpush1.bf16.msra.mxu0 0
    %1002 = vmatprep.subr.bf16.mxu0 0
    %1003 = vmatpush1.bf16.msra.mxu0 0
    %1004 = vmatprep.subr.bf16.mxu0 0
    %1005 = vmatpush1.bf16.msra.mxu0 0
    %1006 = vmatprep.subr.bf16.mxu0 0
    %1007 = vmatpush1.bf16.msra.mxu0 0
    %1008 = vmatprep.subr.bf16.mxu0 %v835
    %1009 = vmatpush1.bf16.msra.mxu0 %v834
    %1010 = vmatprep.subr.bf16.mxu0 %v826
    %1011 = vmatpush1.bf16.msra.mxu0 %v825
    %1012 = vmatprep.subr.bf16.mxu0 %v817
    %1013 = vmatpush1.bf16.msra.mxu0 %v816
    %1014 = vmatprep.subr.bf16.mxu0 %v808
    %1015 = vmatpush1.bf16.msra.mxu0 %v807
    %1016 = vmatprep.subr.bf16.mxu0 0
    %1017 = vmatpush2.bf16.msra.mxu0 0
    %1018 = vmatprep.subr.bf16.mxu0 0
    %1019 = vmatpush2.bf16.msra.mxu0 0
    %1020 = vmatprep.subr.bf16.mxu0 0
    %1021 = vmatpush2.bf16.msra.mxu0 0
    %1022 = vmatprep.subr.bf16.mxu0 0
    %1023 = vmatpush2.bf16.msra.mxu0 0
    %1024 = vmatprep.subr.bf16.mxu0 0
    %1025 = vmatpush2.bf16.msra.mxu0 0
    %1026 = vmatprep.subr.bf16.mxu0 0
    %1027 = vmatpush2.bf16.msra.mxu0 0
    %1028 = vmatprep.subr.bf16.mxu0 0
    %1029 = vmatpush2.bf16.msra.mxu0 0
    %1030 = vmatprep.subr.bf16.mxu0 0
    %1031 = vmatpush2.bf16.msra.mxu0 0
    %1032 = vmatprep.mubr.bf16.mxu0 0
    %1033 = vmatmul.mubr.bf16.gmra.mxu0 %v875
    %v1034 = vpop.f32.mrf.mxu0
    %v1035 = vadd.f32 %v671, %v1034
    %v1036 = vpop.f32.mrf.mxu0
    %v1037 = vadd.f32 %v675, %v1036
    %v1038 = vpop.f32.mrf.mxu0
    %v1039 = vpop.f32.mrf.mxu0
    %1040 = vdwg.mxu0
    %1041 = vmatprep.subr.bf16.mxu0 0
    %1042 = vmatpush1.bf16.msra.mxu0 0
    %1043 = vmatprep.subr.bf16.mxu0 0
    %1044 = vmatpush1.bf16.msra.mxu0 0
    %1045 = vmatprep.subr.bf16.mxu0 0
    %1046 = vmatpush1.bf16.msra.mxu0 0
    %1047 = vmatprep.subr.bf16.mxu0 0
    %1048 = vmatpush1.bf16.msra.mxu0 0
    %1049 = vmatprep.subr.bf16.mxu0 0
    %1050 = vmatpush1.bf16.msra.mxu0 %v836
    %1051 = vmatprep.subr.bf16.mxu0 0
    %1052 = vmatpush1.bf16.msra.mxu0 %v827
    %1053 = vmatprep.subr.bf16.mxu0 0
    %1054 = vmatpush1.bf16.msra.mxu0 %v818
    %1055 = vmatprep.subr.bf16.mxu0 0
    %1056 = vmatpush1.bf16.msra.mxu0 %v809
    %1057 = vmatprep.subr.bf16.mxu0 0
    %1058 = vmatpush2.bf16.msra.mxu0 0
    %1059 = vmatprep.subr.bf16.mxu0 0
    %1060 = vmatpush2.bf16.msra.mxu0 0
    %1061 = vmatprep.subr.bf16.mxu0 0
    %1062 = vmatpush2.bf16.msra.mxu0 0
    %1063 = vmatprep.subr.bf16.mxu0 0
    %1064 = vmatpush2.bf16.msra.mxu0 0
    %1065 = vmatprep.subr.bf16.mxu0 0
    %1066 = vmatpush2.bf16.msra.mxu0 0
    %1067 = vmatprep.subr.bf16.mxu0 0
    %1068 = vmatpush2.bf16.msra.mxu0 0
    %1069 = vmatprep.subr.bf16.mxu0 0
    %1070 = vmatpush2.bf16.msra.mxu0 0
    %1071 = vmatprep.subr.bf16.mxu0 0
    %1072 = vmatpush2.bf16.msra.mxu0 0
    %1073 = vmatprep.mubr.bf16.mxu0 0
    %1074 = vmatmul.mubr.bf16.gmra.mxu0 %v875
    %v1075 = vpop.f32.mrf.mxu0
    %v1076 = vadd.f32 %v679, %v1075
    %v1077 = vpop.f32.mrf.mxu0
    %v1078 = vpop.f32.mrf.mxu0
    %v1079 = vpop.f32.mrf.mxu0
    %1080 = vdwg.mxu0
    %v1090 = vcombine.low %v912, %v914
    %v1091 = vcombine.low %v953, %v955
    %v1093 = vunpack.c.l.s4 1983009808
    %v1094 = vunpack.c.0.s8 %v1093
    %v1095 = vlaneseq
    %v1096 = vshrl.u32 %v1095, 7
    %v1097 = vsub.s32 %v1094, %v1096
    %v1098 = vrot.slane %v1090, %v1097
    %v1100 = vunpack.c.l.s4 1983009808
    %v1101 = vunpack.c.0.s8 %v1100
    %v1102 = vlaneseq
    %v1103 = vshrl.u32 %v1102, 7
    %v1104 = vsub.s32 %v1101, %v1103
    %v1105 = vrot.slane %v1091, %v1104
    %v1106 = vcombine.low %v1098, %v1105
    %v1107 = vcombine.low %v994, %v996
    %v1108 = vcombine.low %v1035, %v1037
    %v1110 = vunpack.c.l.s4 1983009808
    %v1111 = vunpack.c.0.s8 %v1110
    %v1112 = vlaneseq
    %v1113 = vshrl.u32 %v1112, 7
    %v1114 = vsub.s32 %v1111, %v1113
    %v1115 = vrot.slane %v1107, %v1114
    %v1117 = vunpack.c.l.s4 1983009808
    %v1118 = vunpack.c.0.s8 %v1117
    %v1119 = vlaneseq
    %v1120 = vshrl.u32 %v1119, 7
    %v1121 = vsub.s32 %v1118, %v1120
    %v1122 = vrot.slane %v1108, %v1121
    %v1123 = vcombine.low %v1115, %v1122
    %v1125 = vunpack.c.l.s4 1983009808
    %v1126 = vunpack.c.0.s8 %v1125
    %v1127 = vlaneseq
    %v1128 = vshrl.u32 %v1127, 7
    %v1129 = vsub.s32 %v1126, %v1128
    %v1130 = vrot.slane %v1076, %v1129
    %1134 = vst [vmem:[#allocation7] sm:$0xff] %v1106
    %1135 = vst [vmem:[#allocation7 + $0x8] sm:$0xff] %v1123
    %1136 = vst [vmem:[#allocation7 + $0x10] sm:$0x3] %v1130
    // Predicated region
    $region26: #{_lambda_.1} parent=1 // pred_check
      _
    $region27: #{_lambda_.1} parent=1 // pred_check_branch
      %1138 = sbr.rel (0) target = $region29
    $region28: #{_lambda_.1} parent=1 // pred_region
      %s1140 = ssub.s32 288, 288
      %1141 = vsyncadd [#allocation4], %s1140
      %s1143 = sshll.u32 [#allocation7], 4
      %s1144 = int_to_ptr.vmem [resolvable:$true] %s1143
      %1146 = dma.vmem_to_hbm [thread:$0]  %s1144, 288, %s4, [#allocation4]
    $region29: #{_lambda_.1} parent=1 // pred_fallthru
      _
    // Predicated region
    $region30: #{_lambda_.1} parent=1 // pred_check
      _
    $region31: #{_lambda_.1} parent=1 // pred_check_branch
      %1148 = sbr.rel (0) target = $region33
    $region32: #{_lambda_.1} parent=1 // pred_region
      %1149 = dma.done [#allocation4], 288
    $region33: #{_lambda_.1} parent=1 // pred_fallthru
      _
    %1150 = vsyncpa [#allocation3], 1
    %1151 = vsyncpa [#allocation6], 1
    %1152 = vsyncpa [#allocation4], 1

</llo_original>
